<compile_context>
chip_gen: v7x
topology: tpu7x:2x2x1
jax: 0.10.0
libtpu: 0.0.40
codegen_flags: <defaults>
</compile_context>

<pallas_src>
import functools

import jax
import jax.numpy as jnp
from jax.experimental import pallas as pl
from jax.experimental.pallas import tpu as pltpu


def _round_up(x, m):
    return ((x + m - 1) // m) * m


# ---------------------------------------------------------------------------
# Pallas kernel: fused VAE forward on one row-tile
# ---------------------------------------------------------------------------
def vae_forward_kernel(
    x_ref,              # [TM, Din]
    eps_ref,            # [TM, Z]    standard-normal noise for reparameterization
    w1_ref, b1_ref,     # [Din, H], [1, H]
    w23_ref, b23_ref,   # [H, 2Z],  [1, 2Z]   (fused mu || log_var projection)
    w4_ref, b4_ref,     # [Z, H],   [1, H]
    w5_ref, b5_ref,     # [H, Din], [1, Din]
    out_ref,            # [TM, OUT_W]  packed: [ x_hat | mu | log_var | zero-pad ]
):
    x = x_ref[...]
    eps = eps_ref[...]
    z_dim = eps_ref.shape[1]
    din = x_ref.shape[1]
    tm = out_ref.shape[0]
    out_w = out_ref.shape[1]

    # ---- encode ----
    h = jnp.dot(x, w1_ref[...], preferred_element_type=jnp.float32) + b1_ref[...]
    h = jnp.maximum(h, 0.0)                                    # relu

    # fused mu / log_var projection: one matmul over [H, 2Z]
    ml = jnp.dot(h, w23_ref[...], preferred_element_type=jnp.float32) + b23_ref[...]
    mu = ml[:, :z_dim]
    log_var = ml[:, z_dim:]

    # ---- reparameterization: z = mu + exp(0.5*log_var) * eps ----
    z = mu + jnp.exp(log_var * 0.5) * eps

    # ---- decode ----
    h2 = jnp.dot(z, w4_ref[...], preferred_element_type=jnp.float32) + b4_ref[...]
    h2 = jnp.maximum(h2, 0.0)                                  # relu
    logits = jnp.dot(h2, w5_ref[...], preferred_element_type=jnp.float32) + b5_ref[...]
    x_hat = jax.nn.sigmoid(logits)

    # ---- pack into one lane-dense slab and store with a single full-width vst ----
    pad = out_w - (din + 2 * z_dim)
    pieces = [x_hat, ml]
    if pad > 0:
        pieces.append(jnp.zeros((tm, pad), jnp.float32))
    out_ref[...] = jnp.concatenate(pieces, axis=-1).astype(out_ref.dtype)


# ---------------------------------------------------------------------------
# Python wrapper: tiling, padding, output unpacking
# ---------------------------------------------------------------------------
@functools.partial(jax.jit, static_argnames=("tile_m",))
def vae_forward(x, eps, params, *, tile_m=512):
    """x: [B, A, Din] float32, eps: [B, A, Z] float32 -> (x_hat, mu, log_var)."""
    B, A, Din = x.shape
    Z = eps.shape[-1]
    M = B * A

    # Row tile: multiple of 8 sublanes, no larger than the (padded) row count.
    tm = min(tile_m, _round_up(M, 8))
    tm = _round_up(tm, 8)
    Mp = _round_up(M, tm)
    grid = (Mp // tm,)

    x2 = jnp.pad(x.reshape(M, Din).astype(jnp.float32), ((0, Mp - M), (0, 0)))
    eps2 = jnp.pad(eps.reshape(M, Z).astype(jnp.float32), ((0, Mp - M), (0, 0)))

    # Fuse mu / log_var projections into one weight.
    w23 = jnp.concatenate([params["w2"], params["w3"]], axis=1)   # [H, 2Z]
    b23 = jnp.concatenate([params["b2"], params["b3"]], axis=1)   # [1, 2Z]

    # Packed lane-dense output width (>= 128 lanes, multiple of 128).
    out_w = _round_up(Din + 2 * Z, 128)

    def row_spec(feat):
        return pl.BlockSpec((tm, feat), lambda i: (i, 0))

    def resident_spec(arr):
        return pl.BlockSpec(arr.shape, lambda i: (0, 0))

    weights = (params["w1"], params["b1"], w23, b23,
               params["w4"], params["b4"], params["w5"], params["b5"])

    packed = pl.pallas_call(
        vae_forward_kernel,
        out_shape=jax.ShapeDtypeStruct((Mp, out_w), jnp.float32),
        grid=grid,
        in_specs=[row_spec(Din), row_spec(Z)] + [resident_spec(w) for w in weights],
        out_specs=row_spec(out_w),
        compiler_params=pltpu.CompilerParams(
            dimension_semantics=("parallel",),
        ),
    )(x2, eps2, *weights)

    packed = packed[:M]
    x_hat = packed[:, :Din].reshape(B, A, Din)
    mu = packed[:, Din:Din + Z].reshape(B, A, Z)
    log_var = packed[:, Din + Z:Din + 2 * Z].reshape(B, A, Z)
    return x_hat, mu, log_var


# ---------------------------------------------------------------------------
# Deterministic parameter init (PyTorch nn.Linear default: U(-1/sqrt(fan_in), +))
# Weights kept as [in_features, out_features] (transpose of PyTorch layout).
# ---------------------------------------------------------------------------
def init_vae_params(key, input_dim, h_dim, z_dim):
    def linear(key, fan_in, fan_out):
        kw, kb = jax.random.split(key)
        bound = 1.0 / jnp.sqrt(fan_in)
        w = jax.random.uniform(kw, (fan_in, fan_out), jnp.float32, -bound, bound)
        b = jax.random.uniform(kb, (1, fan_out), jnp.float32, -bound, bound)
        return w, b

    keys = jax.random.split(key, 5)
    w1, b1 = linear(keys[0], input_dim, h_dim)
    w2, b2 = linear(keys[1], h_dim, z_dim)
    w3, b3 = linear(keys[2], h_dim, z_dim)
    w4, b4 = linear(keys[3], z_dim, h_dim)
    w5, b5 = linear(keys[4], h_dim, input_dim)
    return dict(w1=w1, b1=b1, w2=w2, b2=b2, w3=w3, b3=b3,
                w4=w4, b4=b4, w5=w5, b5=b5)


# ---------------------------------------------------------------------------
# Pure-JAX reference for correctness check
# ---------------------------------------------------------------------------
def vae_forward_ref(x, eps, p):
    h = jax.nn.relu(x @ p["w1"] + p["b1"])
    mu = h @ p["w2"] + p["b2"]
    log_var = h @ p["w3"] + p["b3"]
    z = mu + jnp.exp(0.5 * log_var) * eps
    h2 = jax.nn.relu(z @ p["w4"] + p["b4"])
    x_hat = jax.nn.sigmoid(h2 @ p["w5"] + p["b5"])
    return x_hat, mu, log_var


if __name__ == "__main__":
    # Small shapes consistent with the module's usage: x is [batch, n_agents, input_dim].
    input_dim, h_dim, z_dim = 64, 32, 16

    key = jax.random.PRNGKey(0)
    k_param, k_x, k_eps, k_x2, k_eps2 = jax.random.split(key, 5)
    params = init_vae_params(k_param, input_dim, h_dim, z_dim)

    # --- case 1: tiny demo (single grid step) ---
    batch_size, n_agents = 2, 4
    x = jax.random.normal(k_x, (batch_size, n_agents, input_dim), jnp.float32)
    # torch.randn_like(sigma) is stochastic; here eps is a deterministic N(0,1) draw.
    eps = jax.random.normal(k_eps, (batch_size, n_agents, z_dim), jnp.float32)

    x_hat, mu, log_var = vae_forward(x, eps, params)
    jax.block_until_ready((x_hat, mu, log_var))

    r_xhat, r_mu, r_logvar = vae_forward_ref(x, eps, params)
    assert jnp.allclose(x_hat, r_xhat, atol=1e-5, rtol=1e-5)
    assert jnp.allclose(mu, r_mu, atol=1e-5, rtol=1e-5)
    assert jnp.allclose(log_var, r_logvar, atol=1e-5, rtol=1e-5)

    # --- case 2: exercise multi-step grid + row padding (M=20, tile=8 -> 3 steps) ---
    b2_, a2_ = 5, 4
    x_b = jax.random.normal(k_x2, (b2_, a2_, input_dim), jnp.float32)
    eps_b = jax.random.normal(k_eps2, (b2_, a2_, z_dim), jnp.float32)
    xh_b, mu_b, lv_b = vae_forward(x_b, eps_b, params, tile_m=8)
    jax.block_until_ready((xh_b, mu_b, lv_b))
    rxh_b, rmu_b, rlv_b = vae_forward_ref(x_b, eps_b, params)
    assert jnp.allclose(xh_b, rxh_b, atol=1e-5, rtol=1e-5)
    assert jnp.allclose(mu_b, rmu_b, atol=1e-5, rtol=1e-5)
    assert jnp.allclose(lv_b, rlv_b, atol=1e-5, rtol=1e-5)

    print("KERNEL_OK")
</pallas_src>

<mosaic_0001>
module attributes {stable_mosaic.version = 11 : i64} {
  func.func @vae_forward_kernel(%arg0: i32, %arg1: memref<8x64xf32, #tpu.memory_space<vmem>>, %arg2: memref<8x16xf32, #tpu.memory_space<vmem>>, %arg3: memref<64x32xf32, #tpu.memory_space<vmem>>, %arg4: memref<1x32xf32, #tpu.memory_space<vmem>>, %arg5: memref<32x32xf32, #tpu.memory_space<vmem>>, %arg6: memref<1x32xf32, #tpu.memory_space<vmem>>, %arg7: memref<16x32xf32, #tpu.memory_space<vmem>>, %arg8: memref<1x32xf32, #tpu.memory_space<vmem>>, %arg9: memref<32x64xf32, #tpu.memory_space<vmem>>, %arg10: memref<1x64xf32, #tpu.memory_space<vmem>>, %arg11: memref<8x128xf32, #tpu.memory_space<vmem>>) attributes {dimension_semantics = [#tpu.dimension_semantics<parallel>], iteration_bounds = array<i64: 1>, scalar_prefetch = 0 : i64, scratch_operands = 0 : i64, tpu.core_type = #tpu.core_type<tc>, window_params = [{transform_indices = @transform_0, window_bounds = array<i64: 8, 64>}, {transform_indices = @transform_1, window_bounds = array<i64: 8, 16>}, {pipeline_mode = #tpu.pipeline_mode<synchronous>, transform_indices = @transform_2, window_bounds = array<i64: 64, 32>}, {pipeline_mode = #tpu.pipeline_mode<synchronous>, transform_indices = @transform_3, window_bounds = array<i64: 1, 32>}, {pipeline_mode = #tpu.pipeline_mode<synchronous>, transform_indices = @transform_4, window_bounds = array<i64: 32, 32>}, {pipeline_mode = #tpu.pipeline_mode<synchronous>, transform_indices = @transform_5, window_bounds = array<i64: 1, 32>}, {pipeline_mode = #tpu.pipeline_mode<synchronous>, transform_indices = @transform_6, window_bounds = array<i64: 16, 32>}, {pipeline_mode = #tpu.pipeline_mode<synchronous>, transform_indices = @transform_7, window_bounds = array<i64: 1, 32>}, {pipeline_mode = #tpu.pipeline_mode<synchronous>, transform_indices = @transform_8, window_bounds = array<i64: 32, 64>}, {pipeline_mode = #tpu.pipeline_mode<synchronous>, transform_indices = @transform_9, window_bounds = array<i64: 1, 64>}, {transform_indices = @transform_10, window_bounds = array<i64: 8, 128>}]} {
    %c0 = arith.constant 0 : index
    %c0_0 = arith.constant 0 : index
    %0 = vector.load %arg1[%c0, %c0_0] : memref<8x64xf32, #tpu.memory_space<vmem>>, vector<8x64xf32>
    %c0_1 = arith.constant 0 : index
    %c0_2 = arith.constant 0 : index
    %1 = vector.load %arg2[%c0_1, %c0_2] : memref<8x16xf32, #tpu.memory_space<vmem>>, vector<8x16xf32>
    %c0_3 = arith.constant 0 : index
    %c0_4 = arith.constant 0 : index
    %2 = vector.load %arg3[%c0_3, %c0_4] : memref<64x32xf32, #tpu.memory_space<vmem>>, vector<64x32xf32>
    %cst = arith.constant dense<0.000000e+00> : vector<8x32xf32>
    %3 = tpu.matmul %0, %2, %cst {dimension_numbers = #tpu.dot_dimension_numbers<[1], [0], [0], [1], [0, 0, 1, 1], [], []>} : vector<8x64xf32>, vector<64x32xf32>, vector<8x32xf32> -> vector<8x32xf32>
    %c0_5 = arith.constant 0 : index
    %c0_6 = arith.constant 0 : index
    %4 = vector.load %arg4[%c0_5, %c0_6] : memref<1x32xf32, #tpu.memory_space<vmem>>, vector<1x32xf32>
    %5 = vector.broadcast %4 : vector<1x32xf32> to vector<8x32xf32>
    %6 = arith.addf %3, %5 : vector<8x32xf32>
    %cst_7 = arith.constant 0.000000e+00 : f32
    %7 = vector.broadcast %cst_7 : f32 to vector<8x32xf32>
    %8 = arith.maximumf %6, %7 : vector<8x32xf32>
    %c0_8 = arith.constant 0 : index
    %c0_9 = arith.constant 0 : index
    %9 = vector.load %arg5[%c0_8, %c0_9] : memref<32x32xf32, #tpu.memory_space<vmem>>, vector<32x32xf32>
    %cst_10 = arith.constant dense<0.000000e+00> : vector<8x32xf32>
    %10 = tpu.matmul %8, %9, %cst_10 {dimension_numbers = #tpu.dot_dimension_numbers<[1], [0], [0], [1], [0, 0, 1, 1], [], []>} : vector<8x32xf32>, vector<32x32xf32>, vector<8x32xf32> -> vector<8x32xf32>
    %c0_11 = arith.constant 0 : index
    %c0_12 = arith.constant 0 : index
    %11 = vector.load %arg6[%c0_11, %c0_12] : memref<1x32xf32, #tpu.memory_space<vmem>>, vector<1x32xf32>
    %12 = vector.broadcast %11 : vector<1x32xf32> to vector<8x32xf32>
    %13 = arith.addf %10, %12 : vector<8x32xf32>
    %14 = vector.extract_strided_slice %13 {offsets = [0, 0], sizes = [8, 16], strides = [1, 1]} : vector<8x32xf32> to vector<8x16xf32>
    %15 = vector.extract_strided_slice %13 {offsets = [0, 16], sizes = [8, 16], strides = [1, 1]} : vector<8x32xf32> to vector<8x16xf32>
    %cst_13 = arith.constant 5.000000e-01 : f32
    %16 = vector.broadcast %cst_13 : f32 to vector<8x16xf32>
    %17 = arith.mulf %15, %16 : vector<8x16xf32>
    %18 = math.exp %17 : vector<8x16xf32>
    %19 = arith.mulf %18, %1 : vector<8x16xf32>
    %20 = arith.addf %14, %19 : vector<8x16xf32>
    %c0_14 = arith.constant 0 : index
    %c0_15 = arith.constant 0 : index
    %21 = vector.load %arg7[%c0_14, %c0_15] : memref<16x32xf32, #tpu.memory_space<vmem>>, vector<16x32xf32>
    %cst_16 = arith.constant dense<0.000000e+00> : vector<8x32xf32>
    %22 = tpu.matmul %20, %21, %cst_16 {dimension_numbers = #tpu.dot_dimension_numbers<[1], [0], [0], [1], [0, 0, 1, 1], [], []>} : vector<8x16xf32>, vector<16x32xf32>, vector<8x32xf32> -> vector<8x32xf32>
    %c0_17 = arith.constant 0 : index
    %c0_18 = arith.constant 0 : index
    %23 = vector.load %arg8[%c0_17, %c0_18] : memref<1x32xf32, #tpu.memory_space<vmem>>, vector<1x32xf32>
    %24 = vector.broadcast %23 : vector<1x32xf32> to vector<8x32xf32>
    %25 = arith.addf %22, %24 : vector<8x32xf32>
    %cst_19 = arith.constant 0.000000e+00 : f32
    %26 = vector.broadcast %cst_19 : f32 to vector<8x32xf32>
    %27 = arith.maximumf %25, %26 : vector<8x32xf32>
    %c0_20 = arith.constant 0 : index
    %c0_21 = arith.constant 0 : index
    %28 = vector.load %arg9[%c0_20, %c0_21] : memref<32x64xf32, #tpu.memory_space<vmem>>, vector<32x64xf32>
    %cst_22 = arith.constant dense<0.000000e+00> : vector<8x64xf32>
    %29 = tpu.matmul %27, %28, %cst_22 {dimension_numbers = #tpu.dot_dimension_numbers<[1], [0], [0], [1], [0, 0, 1, 1], [], []>} : vector<8x32xf32>, vector<32x64xf32>, vector<8x64xf32> -> vector<8x64xf32>
    %c0_23 = arith.constant 0 : index
    %c0_24 = arith.constant 0 : index
    %30 = vector.load %arg10[%c0_23, %c0_24] : memref<1x64xf32, #tpu.memory_space<vmem>>, vector<1x64xf32>
    %31 = vector.broadcast %30 : vector<1x64xf32> to vector<8x64xf32>
    %32 = arith.addf %29, %31 : vector<8x64xf32>
    %33 = arith.negf %32 : vector<8x64xf32>
    %34 = math.exp %33 : vector<8x64xf32>
    %cst_25 = arith.constant 1.000000e+00 : f32
    %35 = vector.broadcast %cst_25 : f32 to vector<8x64xf32>
    %36 = arith.addf %35, %34 : vector<8x64xf32>
    %37 = arith.divf %35, %36 : vector<8x64xf32>
    %cst_26 = arith.constant 0.000000e+00 : f32
    %38 = vector.broadcast %cst_26 : f32 to vector<8x32xf32>
    %39 = tpu.concatenate %37, %13, %38 in 1 : vector<8x64xf32>, vector<8x32xf32>, vector<8x32xf32> -> vector<8x128xf32>
    %c0_27 = arith.constant 0 : index
    %c0_28 = arith.constant 0 : index
    %40 = vector.load %arg11[%c0_27, %c0_28] : memref<8x128xf32, #tpu.memory_space<vmem>>, vector<8x128xf32>
    tpu.vector_store %arg11[%c0_27, %c0_28], %39 {strides = array<i32>} : memref<8x128xf32, #tpu.memory_space<vmem>>, vector<8x128xf32>,
    return
  }
  func.func @transform_0(%arg0: i32) -> (i32, i32) {
    %c0_i32 = arith.constant 0 : i32
    %c0_i32_0 = arith.constant 0 : i32
    return %arg0, %c0_i32 : i32, i32
  }
  func.func @transform_1(%arg0: i32) -> (i32, i32) {
    %c0_i32 = arith.constant 0 : i32
    %c0_i32_0 = arith.constant 0 : i32
    return %arg0, %c0_i32 : i32, i32
  }
  func.func @transform_2(%arg0: i32) -> (i32, i32) {
    %c0_i32 = arith.constant 0 : i32
    %c0_i32_0 = arith.constant 0 : i32
    %c0_i32_1 = arith.constant 0 : i32
    return %c0_i32, %c0_i32_0 : i32, i32
  }
  func.func @transform_3(%arg0: i32) -> (i32, i32) {
    %c0_i32 = arith.constant 0 : i32
    %c0_i32_0 = arith.constant 0 : i32
    %c0_i32_1 = arith.constant 0 : i32
    return %c0_i32, %c0_i32_0 : i32, i32
  }
  func.func @transform_4(%arg0: i32) -> (i32, i32) {
    %c0_i32 = arith.constant 0 : i32
    %c0_i32_0 = arith.constant 0 : i32
    %c0_i32_1 = arith.constant 0 : i32
    return %c0_i32, %c0_i32_0 : i32, i32
  }
  func.func @transform_5(%arg0: i32) -> (i32, i32) {
    %c0_i32 = arith.constant 0 : i32
    %c0_i32_0 = arith.constant 0 : i32
    %c0_i32_1 = arith.constant 0 : i32
    return %c0_i32, %c0_i32_0 : i32, i32
  }
  func.func @transform_6(%arg0: i32) -> (i32, i32) {
    %c0_i32 = arith.constant 0 : i32
    %c0_i32_0 = arith.constant 0 : i32
    %c0_i32_1 = arith.constant 0 : i32
    return %c0_i32, %c0_i32_0 : i32, i32
  }
  func.func @transform_7(%arg0: i32) -> (i32, i32) {
    %c0_i32 = arith.constant 0 : i32
    %c0_i32_0 = arith.constant 0 : i32
    %c0_i32_1 = arith.constant 0 : i32
    return %c0_i32, %c0_i32_0 : i32, i32
  }
  func.func @transform_8(%arg0: i32) -> (i32, i32) {
    %c0_i32 = arith.constant 0 : i32
    %c0_i32_0 = arith.constant 0 : i32
    %c0_i32_1 = arith.constant 0 : i32
    return %c0_i32, %c0_i32_0 : i32, i32
  }
  func.func @transform_9(%arg0: i32) -> (i32, i32) {
    %c0_i32 = arith.constant 0 : i32
    %c0_i32_0 = arith.constant 0 : i32
    %c0_i32_1 = arith.constant 0 : i32
    return %c0_i32, %c0_i32_0 : i32, i32
  }
  func.func @transform_10(%arg0: i32) -> (i32, i32) {
    %c0_i32 = arith.constant 0 : i32
    %c0_i32_0 = arith.constant 0 : i32
    return %arg0, %c0_i32 : i32, i32
  }
}

</mosaic_0001>

<llo_original>
// kernel: vae_forward.1
$region0: #{vae_forward.1}
  #allocation0 [shape = 'u32[]', space=smem, size = 0x4, offset = 0x4, fixed_abs, tag = 'smem constant byte address 0x4 - core index']
  #allocation1 [shape = 'u32[144,128]{1,0:T(1,128)}', space=vmem, size = 0x12000, scoped, tag = 'internal scratch']
  %s0 = inlined_call_operand.vmem [shape: f32[8,64], index: 0, kind: input, shape index: {}]
  %s1 = inlined_call_operand.vmem [shape: f32[8,16], index: 1, kind: input, shape index: {}]
  %s2 = inlined_call_operand.vmem [shape: f32[64,32], index: 2, kind: input, shape index: {}]
  %s3 = inlined_call_operand.vmem [shape: f32[1,32], index: 3, kind: input, shape index: {}]
  %s4 = inlined_call_operand.vmem [shape: f32[32,32], index: 4, kind: input, shape index: {}]
  %s5 = inlined_call_operand.vmem [shape: f32[1,32], index: 5, kind: input, shape index: {}]
  %s6 = inlined_call_operand.vmem [shape: f32[16,32], index: 6, kind: input, shape index: {}]
  %s7 = inlined_call_operand.vmem [shape: f32[1,32], index: 7, kind: input, shape index: {}]
  %s8 = inlined_call_operand.vmem [shape: f32[32,64], index: 8, kind: input, shape index: {}]
  %s9 = inlined_call_operand.vmem [shape: f32[1,64], index: 9, kind: input, shape index: {}]
  %s10 = inlined_call_operand.vmem [shape: f32[8,128], index: 10, kind: output, shape index: {}]
  %s11 = sld [smem:[#allocation0]]
  $region50: #{vae_forward.1} parent=0
    _
  %s13 = ssub.s32 1, %s11
  %s14 = scalar_select 0, %s13, %s11
  // Predicated region
  $region2: #{vae_forward.1} parent=0 // pred_check
    _
  $region3: #{vae_forward.1} parent=0 // pred_check_branch
    %16 = sbr.rel (0) target = $region5
  $region4: #{vae_forward.1} parent=0 // pred_region
    _
  $region5: #{vae_forward.1} parent=0 // pred_fallthru
    _
  // Predicated region
  $region6: #{vae_forward.1} parent=0 // pred_check
    _
  $region7: #{vae_forward.1} parent=0 // pred_check_branch
    %18 = sbr.rel (0) target = $region9
  $region8: #{vae_forward.1} parent=0 // pred_region
    _
  $region9: #{vae_forward.1} parent=0 // pred_fallthru
    _
  // Predicated region
  $region10: #{vae_forward.1} parent=0 // pred_check
    _
  $region11: #{vae_forward.1} parent=0 // pred_check_branch
    %20 = sbr.rel (0) target = $region13
  $region12: #{vae_forward.1} parent=0 // pred_region
    _
  $region13: #{vae_forward.1} parent=0 // pred_fallthru
    _
  // Predicated region
  $region14: #{vae_forward.1} parent=0 // pred_check
    _
  $region15: #{vae_forward.1} parent=0 // pred_check_branch
    %22 = sbr.rel (0) target = $region17
  $region16: #{vae_forward.1} parent=0 // pred_region
    _
  $region17: #{vae_forward.1} parent=0 // pred_fallthru
    _
  // Predicated region
  $region18: #{vae_forward.1} parent=0 // pred_check
    _
  $region19: #{vae_forward.1} parent=0 // pred_check_branch
    %24 = sbr.rel (0) target = $region21
  $region20: #{vae_forward.1} parent=0 // pred_region
    _
  $region21: #{vae_forward.1} parent=0 // pred_fallthru
    _
  // Predicated region
  $region22: #{vae_forward.1} parent=0 // pred_check
    _
  $region23: #{vae_forward.1} parent=0 // pred_check_branch
    %26 = sbr.rel (0) target = $region25
  $region24: #{vae_forward.1} parent=0 // pred_region
    _
  $region25: #{vae_forward.1} parent=0 // pred_fallthru
    _
  // Predicated region
  $region26: #{vae_forward.1} parent=0 // pred_check
    _
  $region27: #{vae_forward.1} parent=0 // pred_check_branch
    %28 = sbr.rel (0) target = $region29
  $region28: #{vae_forward.1} parent=0 // pred_region
    _
  $region29: #{vae_forward.1} parent=0 // pred_fallthru
    _
  // Predicated region
  $region30: #{vae_forward.1} parent=0 // pred_check
    _
  $region31: #{vae_forward.1} parent=0 // pred_check_branch
    %30 = sbr.rel (0) target = $region33
  $region32: #{vae_forward.1} parent=0 // pred_region
    _
  $region33: #{vae_forward.1} parent=0 // pred_fallthru
    _
  // Predicated region
  $region34: #{vae_forward.1} parent=0 // pred_check
    _
  $region35: #{vae_forward.1} parent=0 // pred_check_branch
    %32 = sbr.rel (0) target = $region37
  $region36: #{vae_forward.1} parent=0 // pred_region
    _
  $region37: #{vae_forward.1} parent=0 // pred_fallthru
    _
  // Predicated region
  $region38: #{vae_forward.1} parent=0 // pred_check
    _
  $region39: #{vae_forward.1} parent=0 // pred_check_branch
    %34 = sbr.rel (0) target = $region41
  $region40: #{vae_forward.1} parent=0 // pred_region
    _
  $region41: #{vae_forward.1} parent=0 // pred_fallthru
    _
  %v35 = vld [vmem:[%s0] sm:$0xff]
  %v36 = vld [vmem:[%s1] sm:$0xff]
  %v37 = vld [vmem:[%s2] sm:$0xff]
  %v38 = vld [vmem:[%s2 + $0x8] sm:$0xff]
  %v39 = vld [vmem:[%s2 + $0x10] sm:$0xff]
  %v40 = vld [vmem:[%s2 + $0x18] sm:$0xff]
  %v41 = vld [vmem:[%s2 + $0x20] sm:$0xff]
  %v42 = vld [vmem:[%s2 + $0x28] sm:$0xff]
  %v43 = vld [vmem:[%s2 + $0x30] sm:$0xff]
  %v44 = vld [vmem:[%s2 + $0x38] sm:$0xff]
  %v45 = vld [vmem:[%s3] sm:$0x1]
  %v47 = vlaneseq
  %v48 = vshrl.u32 %v47, 7
  %v49 = vsub.s32 0, %v48
  %v50 = vrot.slane %v45, %v49
  %vm52 = vcmask 523264
  %v54 = vsel %vm52, %v35, 0
  %56 = vmatprep.subr.mxu0 0.0
  %57 = vmatpush1.msra.mxu0 %v37
  %58 = vmatprep.subr.mxu0 0.0
  %59 = vmatpush1.msra.mxu0 %v38
  %60 = vmatprep.subr.mxu0 0.0
  %61 = vmatpush1.msra.mxu0 %v39
  %62 = vmatprep.subr.mxu0 0.0
  %63 = vmatpush1.msra.mxu0 %v40
  %64 = vmatprep.subr.mxu0 0.0
  %65 = vmatpush1.msra.mxu0 %v41
  %66 = vmatprep.subr.mxu0 0.0
  %67 = vmatpush1.msra.mxu0 %v42
  %68 = vmatprep.subr.mxu0 0.0
  %69 = vmatpush1.msra.mxu0 %v43
  %70 = vmatprep.subr.mxu0 0.0
  %71 = vmatpush1.msra.mxu0 %v44
  %72 = vmatprep.subr.mxu0 0.0
  %73 = vmatpush1.msra.mxu0 0.0
  %74 = vmatprep.subr.mxu0 0.0
  %75 = vmatpush1.msra.mxu0 0.0
  %76 = vmatprep.subr.mxu0 0.0
  %77 = vmatpush1.msra.mxu0 0.0
  %78 = vmatprep.subr.mxu0 0.0
  %79 = vmatpush1.msra.mxu0 0.0
  %80 = vmatprep.subr.mxu0 0.0
  %81 = vmatpush1.msra.mxu0 0.0
  %82 = vmatprep.subr.mxu0 0.0
  %83 = vmatpush1.msra.mxu0 0.0
  %84 = vmatprep.subr.mxu0 0.0
  %85 = vmatpush1.msra.mxu0 0.0
  %86 = vmatprep.subr.mxu0 0.0
  %87 = vmatpush1.msra.mxu0 0.0
  %88 = vmatprep.subr.mxu0 0.0
  %89 = vmatpush1.msra.mxu0 0.0
  %90 = vmatprep.subr.mxu0 0.0
  %91 = vmatpush1.msra.mxu0 0.0
  %92 = vmatprep.subr.mxu0 0.0
  %93 = vmatpush1.msra.mxu0 0.0
  %94 = vmatprep.subr.mxu0 0.0
  %95 = vmatpush1.msra.mxu0 0.0
  %96 = vmatprep.subr.mxu0 0.0
  %97 = vmatpush1.msra.mxu0 0.0
  %98 = vmatprep.subr.mxu0 0.0
  %99 = vmatpush1.msra.mxu0 0.0
  %100 = vmatprep.subr.mxu0 0.0
  %101 = vmatpush1.msra.mxu0 0.0
  %102 = vmatprep.subr.mxu0 0.0
  %103 = vmatpush1.msra.mxu0 0.0
  %104 = vmatprep.subr.mxu0 0.0
  %105 = vmatpush1.msra.mxu0 0.0
  %106 = vmatprep.subr.mxu0 0.0
  %107 = vmatpush1.msra.mxu0 0.0
  %108 = vmatprep.subr.mxu0 0.0
  %109 = vmatpush1.msra.mxu0 0.0
  %110 = vmatprep.subr.mxu0 0.0
  %111 = vmatpush1.msra.mxu0 0.0
  %112 = vmatprep.subr.mxu0 0.0
  %113 = vmatpush1.msra.mxu0 0.0
  %114 = vmatprep.subr.mxu0 0.0
  %115 = vmatpush1.msra.mxu0 0.0
  %116 = vmatprep.subr.mxu0 0.0
  %117 = vmatpush1.msra.mxu0 0.0
  %118 = vmatprep.subr.mxu0 0.0
  %119 = vmatpush1.msra.mxu0 0.0
  %120 = vmatprep.mubr.f32.mxu0 0.0
  %121 = vmatmul.mubr.f32.gmra.mrb[0].mxu0 %v54
  %v122 = vpop.f32.mrb[0].mxu0
  %v123 = vadd.f32 %v50, %v122
  %v124 = vpop.f32.mrb[0].mxu0
  %125 = vdwg.mxu0
  %v126 = vmax.f32 %v123, 0.0
  %v127 = vld [vmem:[%s4] sm:$0xff]
  %v128 = vld [vmem:[%s4 + $0x8] sm:$0xff]
  %v129 = vld [vmem:[%s4 + $0x10] sm:$0xff]
  %v130 = vld [vmem:[%s4 + $0x18] sm:$0xff]
  %v131 = vld [vmem:[%s5] sm:$0x1]
  %v133 = vlaneseq
  %v134 = vshrl.u32 %v133, 7
  %v135 = vsub.s32 0, %v134
  %v136 = vrot.slane %v131, %v135
  %vm138 = vcmask 261120
  %v140 = vsel %vm138, %v126, 0
  %142 = vmatprep.subr.mxu0 0.0
  %143 = vmatpush1.msra.mxu0 %v127
  %144 = vmatprep.subr.mxu0 0.0
  %145 = vmatpush1.msra.mxu0 %v128
  %146 = vmatprep.subr.mxu0 0.0
  %147 = vmatpush1.msra.mxu0 %v129
  %148 = vmatprep.subr.mxu0 0.0
  %149 = vmatpush1.msra.mxu0 %v130
  %150 = vmatprep.subr.mxu0 0.0
  %151 = vmatpush1.msra.mxu0 0.0
  %152 = vmatprep.subr.mxu0 0.0
  %153 = vmatpush1.msra.mxu0 0.0
  %154 = vmatprep.subr.mxu0 0.0
  %155 = vmatpush1.msra.mxu0 0.0
  %156 = vmatprep.subr.mxu0 0.0
  %157 = vmatpush1.msra.mxu0 0.0
  %158 = vmatprep.subr.mxu0 0.0
  %159 = vmatpush1.msra.mxu0 0.0
  %160 = vmatprep.subr.mxu0 0.0
  %161 = vmatpush1.msra.mxu0 0.0
  %162 = vmatprep.subr.mxu0 0.0
  %163 = vmatpush1.msra.mxu0 0.0
  %164 = vmatprep.subr.mxu0 0.0
  %165 = vmatpush1.msra.mxu0 0.0
  %166 = vmatprep.subr.mxu0 0.0
  %167 = vmatpush1.msra.mxu0 0.0
  %168 = vmatprep.subr.mxu0 0.0
  %169 = vmatpush1.msra.mxu0 0.0
  %170 = vmatprep.subr.mxu0 0.0
  %171 = vmatpush1.msra.mxu0 0.0
  %172 = vmatprep.subr.mxu0 0.0
  %173 = vmatpush1.msra.mxu0 0.0
  %174 = vmatprep.subr.mxu0 0.0
  %175 = vmatpush1.msra.mxu0 0.0
  %176 = vmatprep.subr.mxu0 0.0
  %177 = vmatpush1.msra.mxu0 0.0
  %178 = vmatprep.subr.mxu0 0.0
  %179 = vmatpush1.msra.mxu0 0.0
  %180 = vmatprep.subr.mxu0 0.0
  %181 = vmatpush1.msra.mxu0 0.0
  %182 = vmatprep.subr.mxu0 0.0
  %183 = vmatpush1.msra.mxu0 0.0
  %184 = vmatprep.subr.mxu0 0.0
  %185 = vmatpush1.msra.mxu0 0.0
  %186 = vmatprep.subr.mxu0 0.0
  %187 = vmatpush1.msra.mxu0 0.0
  %188 = vmatprep.subr.mxu0 0.0
  %189 = vmatpush1.msra.mxu0 0.0
  %190 = vmatprep.subr.mxu0 0.0
  %191 = vmatpush1.msra.mxu0 0.0
  %192 = vmatprep.subr.mxu0 0.0
  %193 = vmatpush1.msra.mxu0 0.0
  %194 = vmatprep.subr.mxu0 0.0
  %195 = vmatpush1.msra.mxu0 0.0
  %196 = vmatprep.subr.mxu0 0.0
  %197 = vmatpush1.msra.mxu0 0.0
  %198 = vmatprep.subr.mxu0 0.0
  %199 = vmatpush1.msra.mxu0 0.0
  %200 = vmatprep.subr.mxu0 0.0
  %201 = vmatpush1.msra.mxu0 0.0
  %202 = vmatprep.subr.mxu0 0.0
  %203 = vmatpush1.msra.mxu0 0.0
  %204 = vmatprep.subr.mxu0 0.0
  %205 = vmatpush1.msra.mxu0 0.0
  %206 = vmatprep.mubr.f32.mxu0 0.0
  %207 = vmatmul.mubr.f32.gmra.mrb[0].mxu0 %v140
  %v208 = vpop.f32.mrb[0].mxu0
  %v209 = vadd.f32 %v136, %v208
  %v210 = vpop.f32.mrb[0].mxu0
  %211 = vdwg.mxu0
  %v212 = vmul.f32 %v209, 0.5
  %v213 = vmul.f32 %v212, 1.442695
  %v214 = vpow.pop %v213
  %216 = vrot.lane.b32.xlu0 %v36, 16
  %v217 = vpop.permute.xlu0 %216
  %v219 = vmul.f32 %v214, %v217
  %221 = vrot.lane.b32.xlu0 %v219, 112
  %v222 = vpop.permute.xlu0 %221
  %v224 = vadd.f32 %v209, %v222
  %v225 = vld [vmem:[%s6] sm:$0xff]
  %v226 = vld [vmem:[%s6 + $0x8] sm:$0xff]
  %v227 = vld [vmem:[%s7] sm:$0x1]
  %v229 = vlaneseq
  %v230 = vshrl.u32 %v229, 7
  %v231 = vsub.s32 0, %v230
  %v232 = vrot.slane %v227, %v231
  %vm234 = vcmask 130048
  %v236 = vsel %vm234, %v224, 0
  %238 = vmatprep.subr.mxu0 0.0
  %239 = vmatpush1.msra.mxu0 %v225
  %240 = vmatprep.subr.mxu0 0.0
  %241 = vmatpush1.msra.mxu0 %v226
  %242 = vmatprep.subr.mxu0 0.0
  %243 = vmatpush1.msra.mxu0 0.0
  %244 = vmatprep.subr.mxu0 0.0
  %245 = vmatpush1.msra.mxu0 0.0
  %246 = vmatprep.subr.mxu0 0.0
  %247 = vmatpush1.msra.mxu0 0.0
  %248 = vmatprep.subr.mxu0 0.0
  %249 = vmatpush1.msra.mxu0 0.0
  %250 = vmatprep.subr.mxu0 0.0
  %251 = vmatpush1.msra.mxu0 0.0
  %252 = vmatprep.subr.mxu0 0.0
  %253 = vmatpush1.msra.mxu0 0.0
  %254 = vmatprep.subr.mxu0 0.0
  %255 = vmatpush1.msra.mxu0 0.0
  %256 = vmatprep.subr.mxu0 0.0
  %257 = vmatpush1.msra.mxu0 0.0
  %258 = vmatprep.subr.mxu0 0.0
  %259 = vmatpush1.msra.mxu0 0.0
  %260 = vmatprep.subr.mxu0 0.0
  %261 = vmatpush1.msra.mxu0 0.0
  %262 = vmatprep.subr.mxu0 0.0
  %263 = vmatpush1.msra.mxu0 0.0
  %264 = vmatprep.subr.mxu0 0.0
  %265 = vmatpush1.msra.mxu0 0.0
  %266 = vmatprep.subr.mxu0 0.0
  %267 = vmatpush1.msra.mxu0 0.0
  %268 = vmatprep.subr.mxu0 0.0
  %269 = vmatpush1.msra.mxu0 0.0
  %270 = vmatprep.subr.mxu0 0.0
  %271 = vmatpush1.msra.mxu0 0.0
  %272 = vmatprep.subr.mxu0 0.0
  %273 = vmatpush1.msra.mxu0 0.0
  %274 = vmatprep.subr.mxu0 0.0
  %275 = vmatpush1.msra.mxu0 0.0
  %276 = vmatprep.subr.mxu0 0.0
  %277 = vmatpush1.msra.mxu0 0.0
  %278 = vmatprep.subr.mxu0 0.0
  %279 = vmatpush1.msra.mxu0 0.0
  %280 = vmatprep.subr.mxu0 0.0
  %281 = vmatpush1.msra.mxu0 0.0
  %282 = vmatprep.subr.mxu0 0.0
  %283 = vmatpush1.msra.mxu0 0.0
  %284 = vmatprep.subr.mxu0 0.0
  %285 = vmatpush1.msra.mxu0 0.0
  %286 = vmatprep.subr.mxu0 0.0
  %287 = vmatpush1.msra.mxu0 0.0
  %288 = vmatprep.subr.mxu0 0.0
  %289 = vmatpush1.msra.mxu0 0.0
  %290 = vmatprep.subr.mxu0 0.0
  %291 = vmatpush1.msra.mxu0 0.0
  %292 = vmatprep.subr.mxu0 0.0
  %293 = vmatpush1.msra.mxu0 0.0
  %294 = vmatprep.subr.mxu0 0.0
  %295 = vmatpush1.msra.mxu0 0.0
  %296 = vmatprep.subr.mxu0 0.0
  %297 = vmatpush1.msra.mxu0 0.0
  %298 = vmatprep.subr.mxu0 0.0
  %299 = vmatpush1.msra.mxu0 0.0
  %300 = vmatprep.subr.mxu0 0.0
  %301 = vmatpush1.msra.mxu0 0.0
  %302 = vmatprep.mubr.f32.mxu0 0.0
  %303 = vmatmul.mubr.f32.gmra.mrb[0].mxu0 %v236
  %v304 = vpop.f32.mrb[0].mxu0
  %v305 = vadd.f32 %v232, %v304
  %v306 = vpop.f32.mrb[0].mxu0
  %307 = vdwg.mxu0
  %v308 = vmax.f32 %v305, 0.0
  %v309 = vld [vmem:[%s8] sm:$0xff]
  %v310 = vld [vmem:[%s8 + $0x8] sm:$0xff]
  %v311 = vld [vmem:[%s8 + $0x10] sm:$0xff]
  %v312 = vld [vmem:[%s8 + $0x18] sm:$0xff]
  %v313 = vld [vmem:[%s9] sm:$0x1]
  %v315 = vlaneseq
  %v316 = vshrl.u32 %v315, 7
  %v317 = vsub.s32 0, %v316
  %v318 = vrot.slane %v313, %v317
  %v321 = vsel %vm138, %v308, 0
  %323 = vmatprep.subr.mxu0 0.0
  %324 = vmatpush1.msra.mxu0 %v309
  %325 = vmatprep.subr.mxu0 0.0
  %326 = vmatpush1.msra.mxu0 %v310
  %327 = vmatprep.subr.mxu0 0.0
  %328 = vmatpush1.msra.mxu0 %v311
  %329 = vmatprep.subr.mxu0 0.0
  %330 = vmatpush1.msra.mxu0 %v312
  %331 = vmatprep.subr.mxu0 0.0
  %332 = vmatpush1.msra.mxu0 0.0
  %333 = vmatprep.subr.mxu0 0.0
  %334 = vmatpush1.msra.mxu0 0.0
  %335 = vmatprep.subr.mxu0 0.0
  %336 = vmatpush1.msra.mxu0 0.0
  %337 = vmatprep.subr.mxu0 0.0
  %338 = vmatpush1.msra.mxu0 0.0
  %339 = vmatprep.subr.mxu0 0.0
  %340 = vmatpush1.msra.mxu0 0.0
  %341 = vmatprep.subr.mxu0 0.0
  %342 = vmatpush1.msra.mxu0 0.0
  %343 = vmatprep.subr.mxu0 0.0
  %344 = vmatpush1.msra.mxu0 0.0
  %345 = vmatprep.subr.mxu0 0.0
  %346 = vmatpush1.msra.mxu0 0.0
  %347 = vmatprep.subr.mxu0 0.0
  %348 = vmatpush1.msra.mxu0 0.0
  %349 = vmatprep.subr.mxu0 0.0
  %350 = vmatpush1.msra.mxu0 0.0
  %351 = vmatprep.subr.mxu0 0.0
  %352 = vmatpush1.msra.mxu0 0.0
  %353 = vmatprep.subr.mxu0 0.0
  %354 = vmatpush1.msra.mxu0 0.0
  %355 = vmatprep.subr.mxu0 0.0
  %356 = vmatpush1.msra.mxu0 0.0
  %357 = vmatprep.subr.mxu0 0.0
  %358 = vmatpush1.msra.mxu0 0.0
  %359 = vmatprep.subr.mxu0 0.0
  %360 = vmatpush1.msra.mxu0 0.0
  %361 = vmatprep.subr.mxu0 0.0
  %362 = vmatpush1.msra.mxu0 0.0
  %363 = vmatprep.subr.mxu0 0.0
  %364 = vmatpush1.msra.mxu0 0.0
  %365 = vmatprep.subr.mxu0 0.0
  %366 = vmatpush1.msra.mxu0 0.0
  %367 = vmatprep.subr.mxu0 0.0
  %368 = vmatpush1.msra.mxu0 0.0
  %369 = vmatprep.subr.mxu0 0.0
  %370 = vmatpush1.msra.mxu0 0.0
  %371 = vmatprep.subr.mxu0 0.0
  %372 = vmatpush1.msra.mxu0 0.0
  %373 = vmatprep.subr.mxu0 0.0
  %374 = vmatpush1.msra.mxu0 0.0
  %375 = vmatprep.subr.mxu0 0.0
  %376 = vmatpush1.msra.mxu0 0.0
  %377 = vmatprep.subr.mxu0 0.0
  %378 = vmatpush1.msra.mxu0 0.0
  %379 = vmatprep.subr.mxu0 0.0
  %380 = vmatpush1.msra.mxu0 0.0
  %381 = vmatprep.subr.mxu0 0.0
  %382 = vmatpush1.msra.mxu0 0.0
  %383 = vmatprep.subr.mxu0 0.0
  %384 = vmatpush1.msra.mxu0 0.0
  %385 = vmatprep.subr.mxu0 0.0
  %386 = vmatpush1.msra.mxu0 0.0
  %387 = vmatprep.mubr.f32.mxu0 0.0
  %388 = vmatmul.mubr.f32.gmra.mrb[0].mxu0 %v321
  %v389 = vpop.f32.mrb[0].mxu0
  %v390 = vadd.f32 %v318, %v389
  %v391 = vpop.f32.mrb[0].mxu0
  %392 = vdwg.mxu0
  %v393 = vxor.u32 %v390, 2147483648
  %v394 = vmul.f32 %v393, 1.442695
  %v395 = vpow.pop %v394
  %v396 = vadd.f32 %v395, 1.0
  %v397 = vrcp.pop %v396
  %v398 = vmul.f32 1.0, %v397
  %400 = vrot.lane.b32.xlu0 %v209, 64
  %v401 = vpop.permute.xlu0 %400
  %v403 = vsel %vm52, %v398, %v401
  %vm404 = vcmask 785408
  %v405 = vsel %vm404, %v403, 0.0
  %406 = vst [vmem:[%s10] sm:$0xff] %v405
  // Predicated region
  $region42: #{vae_forward.1} parent=0 // pred_check
    _
  $region43: #{vae_forward.1} parent=0 // pred_check_branch
    %408 = sbr.rel (0) target = $region45
  $region44: #{vae_forward.1} parent=0 // pred_region
    _
  $region45: #{vae_forward.1} parent=0 // pred_fallthru
    _
  // Predicated region
  $region46: #{vae_forward.1} parent=0 // pred_check
    _
  $region47: #{vae_forward.1} parent=0 // pred_check_branch
    %410 = sbr.rel (0) target = $region49
  $region48: #{vae_forward.1} parent=0 // pred_region
    _
  $region49: #{vae_forward.1} parent=0 // pred_fallthru
    _

</llo_original>
